<compile_context>
chip_gen: v7x
topology: tpu7x:2x2x1
jax: 0.10.0
libtpu: 0.0.40
codegen_flags: <defaults>
</compile_context>

<pallas_src>
import math

import jax
import jax.numpy as jnp
import numpy as np
from jax.experimental import pallas as pl
from jax.experimental.pallas import tpu as pltpu


def _round_up(v, m):
    return ((v + m - 1) // m) * m


def _apply_activation(y, act):
    if act == "gelu":            # torch.nn.GELU() default: exact erf form
        return 0.5 * y * (1.0 + jax.lax.erf(y * (1.0 / math.sqrt(2.0))))
    if act == "relu":            # torch.nn.ReLU()
        return jnp.maximum(y, 0.0)
    if act == "tanh":            # torch.nn.Tanh()
        return jnp.tanh(y)
    if act in ("identity", "linear", None):
        return y
    raise ValueError(f"unsupported activation: {act}")


# ----------------------------------------------------------------------------
# Path 2: per-layer tiled matmul (+ bias + activation) kernels
# ----------------------------------------------------------------------------
def _make_linear_act_kernel_kred(act):
    """Kernel for one (bm, bn) output tile; grid axis 2 reduces over K."""

    def kernel(x_ref, w_ref, b_ref, o_ref, acc_ref):
        k = pl.program_id(2)

        @pl.when(k == 0)
        def _():
            acc_ref[...] = jnp.zeros_like(acc_ref)

        acc_ref[...] += jnp.dot(x_ref[...], w_ref[...],
                                preferred_element_type=jnp.float32)

        @pl.when(k == pl.num_programs(2) - 1)
        def _():
            y = acc_ref[...] + b_ref[...].astype(jnp.float32)
            o_ref[...] = _apply_activation(y, act).astype(o_ref.dtype)

    return kernel


def _make_linear_act_kernel_single(act):
    """K fits in one block: no scratch accumulator, no pl.when."""

    def kernel(x_ref, w_ref, b_ref, o_ref):
        y = jnp.dot(x_ref[...], w_ref[...], preferred_element_type=jnp.float32)
        y = y + b_ref[...].astype(jnp.float32)
        o_ref[...] = _apply_activation(y, act).astype(o_ref.dtype)

    return kernel


def linear_act(x, w_io, bias, act="gelu", *, bm=256, bn=256, bk=512,
               out_dtype=None):
    """Fused y = activation(x @ w_io + bias).

    x     : [..., D_in]
    w_io  : [D_in, D_out]   torch weight pre-transposed ONCE at init
    bias  : [D_out]
    """
    *lead, d_in = x.shape
    d_out = w_io.shape[1]
    m = int(np.prod(lead)) if lead else 1
    out_dtype = out_dtype or x.dtype

    x2d = x.reshape(m, d_in)

    bm = min(bm, _round_up(m, 8))
    bn = min(bn, _round_up(d_out, 128))
    bk = min(bk, _round_up(d_in, 128))

    m_pad = _round_up(m, bm)
    k_pad = _round_up(d_in, bk)
    n_pad = _round_up(d_out, bn)

    x_p = jnp.pad(x2d, ((0, m_pad - m), (0, k_pad - d_in)))
    w_p = jnp.pad(w_io, ((0, k_pad - d_in), (0, n_pad - d_out)))
    b_p = jnp.pad(bias, (0, n_pad - d_out)).reshape(1, n_pad)

    k_steps = k_pad // bk

    in_itemsize = jnp.dtype(x_p.dtype).itemsize
    out_itemsize = jnp.dtype(out_dtype).itemsize
    cost = pl.CostEstimate(
        flops=2 * m_pad * n_pad * k_pad,
        transcendentals=m_pad * n_pad if act in ("gelu", "tanh") else 0,
        bytes_accessed=(m_pad * k_pad + k_pad * n_pad) * in_itemsize
        + m_pad * n_pad * out_itemsize,
    )

    if k_steps == 1:
        grid = (m_pad // bm, n_pad // bn)
        grid_spec = pltpu.PrefetchScalarGridSpec(
            num_scalar_prefetch=0,
            grid=grid,
            in_specs=[
                pl.BlockSpec((bm, k_pad), lambda i, j: (i, 0)),
                pl.BlockSpec((k_pad, bn), lambda i, j: (0, j)),
                pl.BlockSpec((1, bn), lambda i, j: (0, j)),
            ],
            out_specs=pl.BlockSpec((bm, bn), lambda i, j: (i, j)),
        )
        kernel = _make_linear_act_kernel_single(act)
        semantics = ("parallel", "parallel")
    else:
        grid = (m_pad // bm, n_pad // bn, k_steps)
        grid_spec = pltpu.PrefetchScalarGridSpec(
            num_scalar_prefetch=0,
            grid=grid,
            in_specs=[
                pl.BlockSpec((bm, bk), lambda i, j, k: (i, k)),   # activations
                pl.BlockSpec((bk, bn), lambda i, j, k: (k, j)),   # weights
                pl.BlockSpec((1, bn), lambda i, j, k: (0, j)),    # bias
            ],
            out_specs=pl.BlockSpec((bm, bn), lambda i, j, k: (i, j)),
            scratch_shapes=[pltpu.VMEM((bm, bn), jnp.float32)],
        )
        kernel = _make_linear_act_kernel_kred(act)
        semantics = ("parallel", "parallel", "arbitrary")

    out = pl.pallas_call(
        kernel,
        out_shape=jax.ShapeDtypeStruct((m_pad, n_pad), out_dtype),
        grid_spec=grid_spec,
        compiler_params=pltpu.CompilerParams(
            dimension_semantics=semantics,
            vmem_limit_bytes=48 * 1024 * 1024,
        ),
        cost_estimate=cost,
    )(x_p, w_p, b_p)

    out = out[:m, :d_out]
    return out.reshape(*lead, d_out)


# ----------------------------------------------------------------------------
# Path 1: fully-fused multi-layer FFN kernel (intermediates never leave VMEM)
# ----------------------------------------------------------------------------
def _make_fused_ffn_kernel(acts):
    n_layers = len(acts)

    def kernel(*refs):
        x_ref = refs[0]
        o_ref = refs[1 + 2 * n_layers]
        h = x_ref[...]
        for li, act in enumerate(acts):
            w_ref = refs[1 + 2 * li]
            b_ref = refs[2 + 2 * li]
            y = jnp.dot(h, w_ref[...], preferred_element_type=jnp.float32)
            y = _apply_activation(y + b_ref[...].astype(jnp.float32), act)
            if li + 1 < n_layers:
                # Keep intermediates in the next layer's MXU input dtype
                # (matches the per-layer pipeline semantics exactly).
                h = y.astype(refs[1 + 2 * (li + 1)].dtype)
            else:
                o_ref[...] = y.astype(o_ref.dtype)

    return kernel


def _fused_ffn(x, layers, *, bm=512, out_dtype=None):
    *lead, d_in = x.shape
    m = int(np.prod(lead)) if lead else 1
    out_dtype = out_dtype or x.dtype

    bm = min(bm, _round_up(m, 8))
    m_pad = _round_up(m, bm)

    k0_pad = _round_up(d_in, 128)
    x_p = jnp.pad(x.reshape(m, d_in), ((0, m_pad - m), (0, k0_pad - d_in)))

    acts = [a for (_w, _b, a, _p) in layers]
    w_ps, b_ps = [], []
    prev_pad = k0_pad
    for w_io, b, _act, _p in layers:
        k_i, n_i = w_io.shape
        n_pad = _round_up(n_i, 128)
        w_ps.append(jnp.pad(w_io, ((0, prev_pad - k_i), (0, n_pad - n_i))))
        b_ps.append(jnp.pad(b, (0, n_pad - n_i)).reshape(1, n_pad))
        prev_pad = n_pad
    n_last = layers[-1][0].shape[1]
    n_last_pad = prev_pad

    grid = (m_pad // bm,)

    in_specs = [pl.BlockSpec((bm, k0_pad), lambda i: (i, 0))]
    operands = [x_p]
    for w_p, b_p in zip(w_ps, b_ps):
        in_specs.append(pl.BlockSpec(w_p.shape, lambda i: (0, 0)))   # resident
        in_specs.append(pl.BlockSpec(b_p.shape, lambda i: (0, 0)))   # resident
        operands.extend([w_p, b_p])

    flops = 0
    transcendentals = 0
    bytes_accessed = m_pad * k0_pad * jnp.dtype(x_p.dtype).itemsize
    prev = k0_pad
    for w_p, act in zip(w_ps, acts):
        h_pad = w_p.shape[1]
        flops += 2 * m_pad * prev * h_pad
        if act in ("gelu", "tanh"):
            transcendentals += m_pad * h_pad
        bytes_accessed += w_p.size * jnp.dtype(w_p.dtype).itemsize + h_pad * 4
        prev = h_pad
    bytes_accessed += m_pad * n_last_pad * jnp.dtype(out_dtype).itemsize
    cost = pl.CostEstimate(flops=flops, transcendentals=transcendentals,
                           bytes_accessed=bytes_accessed)

    out = pl.pallas_call(
        _make_fused_ffn_kernel(acts),
        out_shape=jax.ShapeDtypeStruct((m_pad, n_last_pad), out_dtype),
        grid_spec=pltpu.PrefetchScalarGridSpec(
            num_scalar_prefetch=0,
            grid=grid,
            in_specs=in_specs,
            out_specs=pl.BlockSpec((bm, n_last_pad), lambda i: (i, 0)),
        ),
        compiler_params=pltpu.CompilerParams(
            dimension_semantics=("parallel",),
            vmem_limit_bytes=48 * 1024 * 1024,
        ),
        cost_estimate=cost,
    )(*operands)

    out = out[:m, :n_last]
    return out.reshape(*lead, n_last)


def _fused_vmem_bytes(m_block, d_in, layers, x_dtype, out_dtype):
    """Rough VMEM footprint of the fused kernel (double-buffered x / out)."""
    k0_pad = _round_up(d_in, 128)
    total = 2 * m_block * k0_pad * jnp.dtype(x_dtype).itemsize
    prev = k0_pad
    for w_io, _b, _a, _p in layers:
        h_pad = _round_up(w_io.shape[1], 128)
        total += prev * h_pad * jnp.dtype(w_io.dtype).itemsize       # weight
        total += h_pad * 4                                           # bias
        total += m_block * h_pad * 4                                 # f32 interm
        prev = h_pad
    total += 2 * m_block * prev * jnp.dtype(out_dtype).itemsize
    return total


# ----------------------------------------------------------------------------
# Public forward pass
# ----------------------------------------------------------------------------
_FUSED_VMEM_BUDGET = 24 * 1024 * 1024     # leaves headroom in v7x's 64 MiB VMEM


def feed_forward(x, layers, *, fuse=True):
    """layers: list of (w_io [D_in, D_out], bias [D_out], act_name, dropout_p).

    dropout: identity for p == 0.0 / inference.
    """
    # TODO(synk): training-mode dropout (torch.nn.Dropout with p > 0) not implemented.
    *lead, d_in = x.shape
    m = int(np.prod(lead)) if lead else 1
    bm = min(512, _round_up(m, 8))

    if fuse and _fused_vmem_bytes(bm, d_in, layers, x.dtype,
                                  x.dtype) <= _FUSED_VMEM_BUDGET:
        return _fused_ffn(x, layers, bm=bm)

    out = x
    for w_io, b, act, _p in layers:
        out = linear_act(out, w_io, b, act=act)
    return out


# ----------------------------------------------------------------------------
# Self-test
# ----------------------------------------------------------------------------
if __name__ == "__main__":
    # FeedForward(input_dim=32, num_layers=2, hidden_dims=[64, 32],
    #             activations=[GELU(), ReLU()], dropout=0.0)
    batch, seq = 2, 8
    input_dim = 32
    hidden_dims = [64, 32]
    acts = ["gelu", "relu"]

    key = jax.random.PRNGKey(0)
    kx, key = jax.random.split(key)
    x = jax.random.normal(kx, (batch, seq, input_dim), jnp.float32)

    # Deterministic torch.nn.Linear-style init: U(-1/sqrt(in), 1/sqrt(in)),
    # created in torch layout [out, in] and transposed ONCE here (init time).
    layers = []
    d_in = input_dim
    for d_out, act in zip(hidden_dims, acts):
        kw, kb, key = jax.random.split(key, 3)
        bound = 1.0 / math.sqrt(d_in)
        w_torch = jax.random.uniform(kw, (d_out, d_in), jnp.float32,
                                     minval=-bound, maxval=bound)
        b = jax.random.uniform(kb, (d_out,), jnp.float32,
                               minval=-bound, maxval=bound)
        layers.append((jnp.asarray(w_torch.T), b, act, 0.0))
        d_in = d_out

    # Pure-JAX reference of the same forward pass.
    ref = x
    for w_io, b, act, _p in layers:
        ref = _apply_activation(ref @ w_io + b, act)

    # 1) fused multi-layer path (default for these sizes).
    out = feed_forward(x, layers)
    jax.block_until_ready(out)
    assert out.shape == (batch, seq, hidden_dims[-1])
    assert jnp.allclose(out, ref, atol=1e-4, rtol=1e-4), \
        float(jnp.max(jnp.abs(out - ref)))

    # 2) per-layer tiled path (forced) must match too.
    out_pl = feed_forward(x, layers, fuse=False)
    jax.block_until_ready(out_pl)
    assert jnp.allclose(out_pl, ref, atol=1e-4, rtol=1e-4), \
        float(jnp.max(jnp.abs(out_pl - ref)))

    # 3) bf16 fast path: bf16 MXU inputs, f32 accumulate + epilogue.
    layers_bf16 = [(w.astype(jnp.bfloat16), b, act, p)
                   for w, b, act, p in layers]
    out_bf16 = feed_forward(x.astype(jnp.bfloat16), layers_bf16)
    jax.block_until_ready(out_bf16)
    assert jnp.allclose(out_bf16.astype(jnp.float32), ref,
                        atol=5e-2, rtol=5e-2)

    # 4) exercise the K-reduction (multi-K-step) tiled kernel explicitly.
    km, kk, kn = 64, 256, 256
    k1, k2, k3, key = jax.random.split(key, 4)
    xr = jax.random.normal(k1, (km, kk), jnp.float32)
    wr = jax.random.normal(k2, (kk, kn), jnp.float32) * 0.05
    br = jax.random.normal(k3, (kn,), jnp.float32) * 0.05
    yr = linear_act(xr, wr, br, act="gelu", bk=128)   # forces 2 K steps
    jax.block_until_ready(yr)
    yr_ref = _apply_activation(xr @ wr + br, "gelu")
    assert jnp.allclose(yr, yr_ref, atol=1e-4, rtol=1e-4), \
        float(jnp.max(jnp.abs(yr - yr_ref)))

    print("KERNEL_OK")
</pallas_src>

<mosaic_0001>
module attributes {stable_mosaic.version = 11 : i64} {
  func.func @kernel(%arg0: i32, %arg1: memref<16x128xf32, #tpu.memory_space<vmem>>, %arg2: memref<128x128xf32, #tpu.memory_space<vmem>>, %arg3: memref<1x128xf32, #tpu.memory_space<vmem>>, %arg4: memref<128x128xf32, #tpu.memory_space<vmem>>, %arg5: memref<1x128xf32, #tpu.memory_space<vmem>>, %arg6: memref<16x128xf32, #tpu.memory_space<vmem>>) attributes {dimension_semantics = [#tpu.dimension_semantics<parallel>], iteration_bounds = array<i64: 1>, scalar_prefetch = 0 : i64, scratch_operands = 0 : i64, tpu.core_type = #tpu.core_type<tc>, window_params = [{transform_indices = @transform_0, window_bounds = array<i64: 16, 128>}, {pipeline_mode = #tpu.pipeline_mode<synchronous>, transform_indices = @transform_1, window_bounds = array<i64: 128, 128>}, {pipeline_mode = #tpu.pipeline_mode<synchronous>, transform_indices = @transform_2, window_bounds = array<i64: 1, 128>}, {pipeline_mode = #tpu.pipeline_mode<synchronous>, transform_indices = @transform_3, window_bounds = array<i64: 128, 128>}, {pipeline_mode = #tpu.pipeline_mode<synchronous>, transform_indices = @transform_4, window_bounds = array<i64: 1, 128>}, {transform_indices = @transform_5, window_bounds = array<i64: 16, 128>}]} {
    %c0 = arith.constant 0 : index
    %c0_0 = arith.constant 0 : index
    %0 = vector.load %arg1[%c0, %c0_0] : memref<16x128xf32, #tpu.memory_space<vmem>>, vector<16x128xf32>
    %c0_1 = arith.constant 0 : index
    %c0_2 = arith.constant 0 : index
    %1 = vector.load %arg2[%c0_1, %c0_2] : memref<128x128xf32, #tpu.memory_space<vmem>>, vector<128x128xf32>
    %cst = arith.constant dense<0.000000e+00> : vector<16x128xf32>
    %2 = tpu.matmul %0, %1, %cst {dimension_numbers = #tpu.dot_dimension_numbers<[1], [0], [0], [1], [0, 0, 1, 1], [], []>} : vector<16x128xf32>, vector<128x128xf32>, vector<16x128xf32> -> vector<16x128xf32>
    %c0_3 = arith.constant 0 : index
    %c0_4 = arith.constant 0 : index
    %3 = vector.load %arg3[%c0_3, %c0_4] : memref<1x128xf32, #tpu.memory_space<vmem>>, vector<1x128xf32>
    %4 = vector.broadcast %3 : vector<1x128xf32> to vector<16x128xf32>
    %5 = arith.addf %2, %4 : vector<16x128xf32>
    %cst_5 = arith.constant 5.000000e-01 : f32
    %6 = vector.broadcast %cst_5 : f32 to vector<16x128xf32>
    %7 = arith.mulf %6, %5 : vector<16x128xf32>
    %cst_6 = arith.constant 0.707106769 : f32
    %8 = vector.broadcast %cst_6 : f32 to vector<16x128xf32>
    %9 = arith.mulf %5, %8 : vector<16x128xf32>
    %10 = math.erf %9 : vector<16x128xf32>
    %cst_7 = arith.constant 1.000000e+00 : f32
    %11 = vector.broadcast %cst_7 : f32 to vector<16x128xf32>
    %12 = arith.addf %11, %10 : vector<16x128xf32>
    %13 = arith.mulf %7, %12 : vector<16x128xf32>
    %c0_8 = arith.constant 0 : index
    %c0_9 = arith.constant 0 : index
    %14 = vector.load %arg4[%c0_8, %c0_9] : memref<128x128xf32, #tpu.memory_space<vmem>>, vector<128x128xf32>
    %cst_10 = arith.constant dense<0.000000e+00> : vector<16x128xf32>
    %15 = tpu.matmul %13, %14, %cst_10 {dimension_numbers = #tpu.dot_dimension_numbers<[1], [0], [0], [1], [0, 0, 1, 1], [], []>} : vector<16x128xf32>, vector<128x128xf32>, vector<16x128xf32> -> vector<16x128xf32>
    %c0_11 = arith.constant 0 : index
    %c0_12 = arith.constant 0 : index
    %16 = vector.load %arg5[%c0_11, %c0_12] : memref<1x128xf32, #tpu.memory_space<vmem>>, vector<1x128xf32>
    %17 = vector.broadcast %16 : vector<1x128xf32> to vector<16x128xf32>
    %18 = arith.addf %15, %17 : vector<16x128xf32>
    %cst_13 = arith.constant 0.000000e+00 : f32
    %19 = vector.broadcast %cst_13 : f32 to vector<16x128xf32>
    %20 = arith.maximumf %18, %19 : vector<16x128xf32>
    %c0_14 = arith.constant 0 : index
    %c0_15 = arith.constant 0 : index
    %21 = vector.load %arg6[%c0_14, %c0_15] : memref<16x128xf32, #tpu.memory_space<vmem>>, vector<16x128xf32>
    tpu.vector_store %arg6[%c0_14, %c0_15], %20 {strides = array<i32>} : memref<16x128xf32, #tpu.memory_space<vmem>>, vector<16x128xf32>,
    return
  }
  func.func @transform_0(%arg0: i32) -> (i32, i32) {
    %c0_i32 = arith.constant 0 : i32
    %c0_i32_0 = arith.constant 0 : i32
    return %arg0, %c0_i32 : i32, i32
  }
  func.func @transform_1(%arg0: i32) -> (i32, i32) {
    %c0_i32 = arith.constant 0 : i32
    %c0_i32_0 = arith.constant 0 : i32
    %c0_i32_1 = arith.constant 0 : i32
    return %c0_i32, %c0_i32_0 : i32, i32
  }
  func.func @transform_2(%arg0: i32) -> (i32, i32) {
    %c0_i32 = arith.constant 0 : i32
    %c0_i32_0 = arith.constant 0 : i32
    %c0_i32_1 = arith.constant 0 : i32
    return %c0_i32, %c0_i32_0 : i32, i32
  }
  func.func @transform_3(%arg0: i32) -> (i32, i32) {
    %c0_i32 = arith.constant 0 : i32
    %c0_i32_0 = arith.constant 0 : i32
    %c0_i32_1 = arith.constant 0 : i32
    return %c0_i32, %c0_i32_0 : i32, i32
  }
  func.func @transform_4(%arg0: i32) -> (i32, i32) {
    %c0_i32 = arith.constant 0 : i32
    %c0_i32_0 = arith.constant 0 : i32
    %c0_i32_1 = arith.constant 0 : i32
    return %c0_i32, %c0_i32_0 : i32, i32
  }
  func.func @transform_5(%arg0: i32) -> (i32, i32) {
    %c0_i32 = arith.constant 0 : i32
    %c0_i32_0 = arith.constant 0 : i32
    return %arg0, %c0_i32 : i32, i32
  }
}

</mosaic_0001>

<llo_original>
// kernel: tpu_custom_call.1
$region0: #{tpu_custom_call.1}
  #allocation0 [shape = 'u32[]', space=smem, size = 0x4, offset = 0x4, fixed_abs, tag = 'smem constant byte address 0x4 - core index']
  #allocation1 [shape = 'u32[144,128]{1,0:T(1,128)}', space=vmem, size = 0x12000, scoped, tag = 'internal scratch']
  %s0 = inlined_call_operand.hbm [shape: f32[16,128], index: 0, kind: input, shape index: {}]
  %s1 = inlined_call_operand.hbm [shape: f32[128,128], index: 1, kind: input, shape index: {}]
  %s2 = inlined_call_operand.vmem [shape: f32[1,128], index: 2, kind: input, shape index: {}]
  %s3 = inlined_call_operand.hbm [shape: f32[128,128], index: 3, kind: input, shape index: {}]
  %s4 = inlined_call_operand.vmem [shape: f32[1,128], index: 4, kind: input, shape index: {}]
  %s5 = inlined_call_operand.hbm [shape: f32[16,128], index: 5, kind: output, shape index: {}]
  %s6 = sld [smem:[#allocation0]]
  $region42: #{tpu_custom_call.1} parent=0
    _
  %s8 = ssub.s32 1, %s6
  %s9 = scalar_select 0, %s8, %s6
  $region1: #{tpu_custom_call.1} parent=0
    #allocation2 [shape = 'u8[8192]{0}', space=vmem, size = 0x2000, scoped, tag = 'input window, operand 0, single buffered']
    #allocation3 [shape = 's32[1]{0}', space=sflag, size = 0x4, scoped, tag = 'scoped memory for tpu_custom_call.1']
    #allocation4 [shape = 's32[1]{0}', space=sflag, size = 0x4, scoped, tag = 'scoped memory for tpu_custom_call.1']
    #allocation5 [shape = 'u8[65536]{0}', space=vmem, size = 0x10000, scoped, tag = 'input window, operand 1, single buffered']
    #allocation6 [shape = 's32[1]{0}', space=sflag, size = 0x4, scoped, tag = 'scoped memory for tpu_custom_call.1']
    #allocation7 [shape = 'u8[65536]{0}', space=vmem, size = 0x10000, scoped, tag = 'input window, operand 3, single buffered']
    #allocation8 [shape = 'u8[8192]{0}', space=vmem, size = 0x2000, scoped, tag = 'output window, operand 0, single buffered']
    %10 = vsyncpa [#allocation3], 0
    %11 = vsyncpa [#allocation6], 0
    %12 = vsyncpa [#allocation4], 0
    // Predicated region
    $region2: #{tpu_custom_call.1} parent=1 // pred_check
      _
    $region3: #{tpu_custom_call.1} parent=1 // pred_check_branch
      %14 = sbr.rel (0) target = $region5
    $region4: #{tpu_custom_call.1} parent=1 // pred_region
      %s16 = ssub.s32 256, 256
      %17 = vsyncadd [#allocation3], %s16
      %s18 = sshll.u32 [#allocation2], 4
      %s19 = int_to_ptr.vmem [resolvable:$true] %s18
      %24 = dma.hbm_to_vmem [thread:$0]  %s0, 256, %s19, [#allocation3], 128, 128, 8
    $region5: #{tpu_custom_call.1} parent=1 // pred_fallthru
      _
    // Predicated region
    $region6: #{tpu_custom_call.1} parent=1 // pred_check
      _
    $region7: #{tpu_custom_call.1} parent=1 // pred_check_branch
      %26 = sbr.rel (0) target = $region9
    $region8: #{tpu_custom_call.1} parent=1 // pred_region
      %s28 = ssub.s32 2048, 2048
      %29 = vsyncadd [#allocation6], %s28
      %s30 = sshll.u32 [#allocation5], 4
      %s31 = int_to_ptr.vmem [resolvable:$true] %s30
      %36 = dma.hbm_to_vmem [thread:$0]  %s1, 2048, %s31, [#allocation6], 128, 128, 8
    $region9: #{tpu_custom_call.1} parent=1 // pred_fallthru
      _
    // Predicated region
    $region10: #{tpu_custom_call.1} parent=1 // pred_check
      _
    $region11: #{tpu_custom_call.1} parent=1 // pred_check_branch
      %38 = sbr.rel (0) target = $region13
    $region12: #{tpu_custom_call.1} parent=1 // pred_region
      _
    $region13: #{tpu_custom_call.1} parent=1 // pred_fallthru
      _
    // Predicated region
    $region14: #{tpu_custom_call.1} parent=1 // pred_check
      _
    $region15: #{tpu_custom_call.1} parent=1 // pred_check_branch
      %40 = sbr.rel (0) target = $region17
    $region16: #{tpu_custom_call.1} parent=1 // pred_region
      %s42 = ssub.s32 2048, 2048
      %43 = vsyncadd [#allocation6], %s42
      %s44 = sshll.u32 [#allocation7], 4
      %s45 = int_to_ptr.vmem [resolvable:$true] %s44
      %50 = dma.hbm_to_vmem [thread:$0]  %s3, 2048, %s45, [#allocation6], 128, 128, 8
    $region17: #{tpu_custom_call.1} parent=1 // pred_fallthru
      _
    // Predicated region
    $region18: #{tpu_custom_call.1} parent=1 // pred_check
      _
    $region19: #{tpu_custom_call.1} parent=1 // pred_check_branch
      %52 = sbr.rel (0) target = $region21
    $region20: #{tpu_custom_call.1} parent=1 // pred_region
      _
    $region21: #{tpu_custom_call.1} parent=1 // pred_fallthru
      _
    // Predicated region
    $region22: #{tpu_custom_call.1} parent=1 // pred_check
      _
    $region23: #{tpu_custom_call.1} parent=1 // pred_check_branch
      %54 = sbr.rel (0) target = $region25
    $region24: #{tpu_custom_call.1} parent=1 // pred_region
      %55 = dma.done [#allocation3], 256
    $region25: #{tpu_custom_call.1} parent=1 // pred_fallthru
      _
    // Predicated region
    $region26: #{tpu_custom_call.1} parent=1 // pred_check
      _
    $region27: #{tpu_custom_call.1} parent=1 // pred_check_branch
      %57 = sbr.rel (0) target = $region29
    $region28: #{tpu_custom_call.1} parent=1 // pred_region
      %58 = dma.done [#allocation6], 2048
    $region29: #{tpu_custom_call.1} parent=1 // pred_fallthru
      _
    // Predicated region
    $region30: #{tpu_custom_call.1} parent=1 // pred_check
      _
    $region31: #{tpu_custom_call.1} parent=1 // pred_check_branch
      %60 = sbr.rel (0) target = $region33
    $region32: #{tpu_custom_call.1} parent=1 // pred_region
      %61 = dma.done [#allocation6], 2048
    $region33: #{tpu_custom_call.1} parent=1 // pred_fallthru
      _
    %v62 = vld [vmem:[#allocation2] sm:$0xff]
    %v63 = vld [vmem:[#allocation2 + $0x8] sm:$0xff]
    %v64 = vld [vmem:[#allocation5] sm:$0xff]
    %v65 = vld [vmem:[#allocation5 + $0x8] sm:$0xff]
    %v66 = vld [vmem:[#allocation5 + $0x10] sm:$0xff]
    %v67 = vld [vmem:[#allocation5 + $0x18] sm:$0xff]
    %v68 = vld [vmem:[#allocation5 + $0x20] sm:$0xff]
    %v69 = vld [vmem:[#allocation5 + $0x28] sm:$0xff]
    %v70 = vld [vmem:[#allocation5 + $0x30] sm:$0xff]
    %v71 = vld [vmem:[#allocation5 + $0x38] sm:$0xff]
    %v72 = vld [vmem:[#allocation5 + $0x40] sm:$0xff]
    %v73 = vld [vmem:[#allocation5 + $0x48] sm:$0xff]
    %v74 = vld [vmem:[#allocation5 + $0x50] sm:$0xff]
    %v75 = vld [vmem:[#allocation5 + $0x58] sm:$0xff]
    %v76 = vld [vmem:[#allocation5 + $0x60] sm:$0xff]
    %v77 = vld [vmem:[#allocation5 + $0x68] sm:$0xff]
    %v78 = vld [vmem:[#allocation5 + $0x70] sm:$0xff]
    %v79 = vld [vmem:[#allocation5 + $0x78] sm:$0xff]
    %v80 = vld [vmem:[%s2] sm:$0x1]
    %v82 = vlaneseq
    %v83 = vshrl.u32 %v82, 7
    %v84 = vsub.s32 0, %v83
    %v85 = vrot.slane %v80, %v84
    %87 = vmatprep.subr.mxu0 0.0
    %88 = vmatpush1.msra.mxu0 %v64
    %89 = vmatprep.subr.mxu0 0.0
    %90 = vmatpush1.msra.mxu0 %v65
    %91 = vmatprep.subr.mxu0 0.0
    %92 = vmatpush1.msra.mxu0 %v66
    %93 = vmatprep.subr.mxu0 0.0
    %94 = vmatpush1.msra.mxu0 %v67
    %95 = vmatprep.subr.mxu0 0.0
    %96 = vmatpush1.msra.mxu0 %v68
    %97 = vmatprep.subr.mxu0 0.0
    %98 = vmatpush1.msra.mxu0 %v69
    %99 = vmatprep.subr.mxu0 0.0
    %100 = vmatpush1.msra.mxu0 %v70
    %101 = vmatprep.subr.mxu0 0.0
    %102 = vmatpush1.msra.mxu0 %v71
    %103 = vmatprep.subr.mxu0 0.0
    %104 = vmatpush1.msra.mxu0 %v72
    %105 = vmatprep.subr.mxu0 0.0
    %106 = vmatpush1.msra.mxu0 %v73
    %107 = vmatprep.subr.mxu0 0.0
    %108 = vmatpush1.msra.mxu0 %v74
    %109 = vmatprep.subr.mxu0 0.0
    %110 = vmatpush1.msra.mxu0 %v75
    %111 = vmatprep.subr.mxu0 0.0
    %112 = vmatpush1.msra.mxu0 %v76
    %113 = vmatprep.subr.mxu0 0.0
    %114 = vmatpush1.msra.mxu0 %v77
    %115 = vmatprep.subr.mxu0 0.0
    %116 = vmatpush1.msra.mxu0 %v78
    %117 = vmatprep.subr.mxu0 0.0
    %118 = vmatpush1.msra.mxu0 %v79
    %119 = vmatprep.subr.mxu0 0.0
    %120 = vmatpush1.msra.mxu0 0.0
    %121 = vmatprep.subr.mxu0 0.0
    %122 = vmatpush1.msra.mxu0 0.0
    %123 = vmatprep.subr.mxu0 0.0
    %124 = vmatpush1.msra.mxu0 0.0
    %125 = vmatprep.subr.mxu0 0.0
    %126 = vmatpush1.msra.mxu0 0.0
    %127 = vmatprep.subr.mxu0 0.0
    %128 = vmatpush1.msra.mxu0 0.0
    %129 = vmatprep.subr.mxu0 0.0
    %130 = vmatpush1.msra.mxu0 0.0
    %131 = vmatprep.subr.mxu0 0.0
    %132 = vmatpush1.msra.mxu0 0.0
    %133 = vmatprep.subr.mxu0 0.0
    %134 = vmatpush1.msra.mxu0 0.0
    %135 = vmatprep.subr.mxu0 0.0
    %136 = vmatpush1.msra.mxu0 0.0
    %137 = vmatprep.subr.mxu0 0.0
    %138 = vmatpush1.msra.mxu0 0.0
    %139 = vmatprep.subr.mxu0 0.0
    %140 = vmatpush1.msra.mxu0 0.0
    %141 = vmatprep.subr.mxu0 0.0
    %142 = vmatpush1.msra.mxu0 0.0
    %143 = vmatprep.subr.mxu0 0.0
    %144 = vmatpush1.msra.mxu0 0.0
    %145 = vmatprep.subr.mxu0 0.0
    %146 = vmatpush1.msra.mxu0 0.0
    %147 = vmatprep.subr.mxu0 0.0
    %148 = vmatpush1.msra.mxu0 0.0
    %149 = vmatprep.subr.mxu0 0.0
    %150 = vmatpush1.msra.mxu0 0.0
    %151 = vmatprep.mubr.f32.mxu0 0.0
    %152 = vmatmul.mubr.f32.gmra.mrb[0].mxu0 %v62
    %v153 = vpop.f32.mrb[0].mxu0
    %v154 = vadd.f32 %v85, %v153
    %v155 = vpop.f32.mrb[0].mxu0
    %156 = vmatprep.mubr.f32.mxu0 0.0
    %157 = vmatmul.mubr.f32.gmra.mrb[0].mxu0 %v63
    %v158 = vpop.f32.mrb[0].mxu0
    %v159 = vadd.f32 %v85, %v158
    %v160 = vpop.f32.mrb[0].mxu0
    %161 = vdwg.mxu0
    %v162 = vmul.f32 %v154, 0.5
    %v163 = vmul.f32 %v159, 0.5
    %v164 = vmul.f32 %v154, 0.70710677
    %v165 = vmul.f32 %v159, 0.70710677
    %v166 = verf.f32.pop %v164
    %v167 = verf.f32.pop %v165
    %v168 = vadd.f32 %v166, 1.0
    %v169 = vadd.f32 %v167, 1.0
    %v170 = vmul.f32 %v162, %v168
    %v171 = vmul.f32 %v163, %v169
    %v172 = vld [vmem:[#allocation7] sm:$0xff]
    %v173 = vld [vmem:[#allocation7 + $0x8] sm:$0xff]
    %v174 = vld [vmem:[#allocation7 + $0x10] sm:$0xff]
    %v175 = vld [vmem:[#allocation7 + $0x18] sm:$0xff]
    %v176 = vld [vmem:[#allocation7 + $0x20] sm:$0xff]
    %v177 = vld [vmem:[#allocation7 + $0x28] sm:$0xff]
    %v178 = vld [vmem:[#allocation7 + $0x30] sm:$0xff]
    %v179 = vld [vmem:[#allocation7 + $0x38] sm:$0xff]
    %v180 = vld [vmem:[#allocation7 + $0x40] sm:$0xff]
    %v181 = vld [vmem:[#allocation7 + $0x48] sm:$0xff]
    %v182 = vld [vmem:[#allocation7 + $0x50] sm:$0xff]
    %v183 = vld [vmem:[#allocation7 + $0x58] sm:$0xff]
    %v184 = vld [vmem:[#allocation7 + $0x60] sm:$0xff]
    %v185 = vld [vmem:[#allocation7 + $0x68] sm:$0xff]
    %v186 = vld [vmem:[#allocation7 + $0x70] sm:$0xff]
    %v187 = vld [vmem:[#allocation7 + $0x78] sm:$0xff]
    %v188 = vld [vmem:[%s4] sm:$0x1]
    %v190 = vlaneseq
    %v191 = vshrl.u32 %v190, 7
    %v192 = vsub.s32 0, %v191
    %v193 = vrot.slane %v188, %v192
    %195 = vmatprep.subr.mxu0 0.0
    %196 = vmatpush1.msra.mxu0 %v172
    %197 = vmatprep.subr.mxu0 0.0
    %198 = vmatpush1.msra.mxu0 %v173
    %199 = vmatprep.subr.mxu0 0.0
    %200 = vmatpush1.msra.mxu0 %v174
    %201 = vmatprep.subr.mxu0 0.0
    %202 = vmatpush1.msra.mxu0 %v175
    %203 = vmatprep.subr.mxu0 0.0
    %204 = vmatpush1.msra.mxu0 %v176
    %205 = vmatprep.subr.mxu0 0.0
    %206 = vmatpush1.msra.mxu0 %v177
    %207 = vmatprep.subr.mxu0 0.0
    %208 = vmatpush1.msra.mxu0 %v178
    %209 = vmatprep.subr.mxu0 0.0
    %210 = vmatpush1.msra.mxu0 %v179
    %211 = vmatprep.subr.mxu0 0.0
    %212 = vmatpush1.msra.mxu0 %v180
    %213 = vmatprep.subr.mxu0 0.0
    %214 = vmatpush1.msra.mxu0 %v181
    %215 = vmatprep.subr.mxu0 0.0
    %216 = vmatpush1.msra.mxu0 %v182
    %217 = vmatprep.subr.mxu0 0.0
    %218 = vmatpush1.msra.mxu0 %v183
    %219 = vmatprep.subr.mxu0 0.0
    %220 = vmatpush1.msra.mxu0 %v184
    %221 = vmatprep.subr.mxu0 0.0
    %222 = vmatpush1.msra.mxu0 %v185
    %223 = vmatprep.subr.mxu0 0.0
    %224 = vmatpush1.msra.mxu0 %v186
    %225 = vmatprep.subr.mxu0 0.0
    %226 = vmatpush1.msra.mxu0 %v187
    %227 = vmatprep.subr.mxu0 0.0
    %228 = vmatpush1.msra.mxu0 0.0
    %229 = vmatprep.subr.mxu0 0.0
    %230 = vmatpush1.msra.mxu0 0.0
    %231 = vmatprep.subr.mxu0 0.0
    %232 = vmatpush1.msra.mxu0 0.0
    %233 = vmatprep.subr.mxu0 0.0
    %234 = vmatpush1.msra.mxu0 0.0
    %235 = vmatprep.subr.mxu0 0.0
    %236 = vmatpush1.msra.mxu0 0.0
    %237 = vmatprep.subr.mxu0 0.0
    %238 = vmatpush1.msra.mxu0 0.0
    %239 = vmatprep.subr.mxu0 0.0
    %240 = vmatpush1.msra.mxu0 0.0
    %241 = vmatprep.subr.mxu0 0.0
    %242 = vmatpush1.msra.mxu0 0.0
    %243 = vmatprep.subr.mxu0 0.0
    %244 = vmatpush1.msra.mxu0 0.0
    %245 = vmatprep.subr.mxu0 0.0
    %246 = vmatpush1.msra.mxu0 0.0
    %247 = vmatprep.subr.mxu0 0.0
    %248 = vmatpush1.msra.mxu0 0.0
    %249 = vmatprep.subr.mxu0 0.0
    %250 = vmatpush1.msra.mxu0 0.0
    %251 = vmatprep.subr.mxu0 0.0
    %252 = vmatpush1.msra.mxu0 0.0
    %253 = vmatprep.subr.mxu0 0.0
    %254 = vmatpush1.msra.mxu0 0.0
    %255 = vmatprep.subr.mxu0 0.0
    %256 = vmatpush1.msra.mxu0 0.0
    %257 = vmatprep.subr.mxu0 0.0
    %258 = vmatpush1.msra.mxu0 0.0
    %259 = vmatprep.mubr.f32.mxu0 0.0
    %260 = vmatmul.mubr.f32.gmra.mrb[0].mxu0 %v170
    %v261 = vpop.f32.mrb[0].mxu0
    %v262 = vadd.f32 %v193, %v261
    %v263 = vpop.f32.mrb[0].mxu0
    %264 = vmatprep.mubr.f32.mxu0 0.0
    %265 = vmatmul.mubr.f32.gmra.mrb[0].mxu0 %v171
    %v266 = vpop.f32.mrb[0].mxu0
    %v267 = vadd.f32 %v193, %v266
    %v268 = vpop.f32.mrb[0].mxu0
    %269 = vdwg.mxu0
    %v270 = vmax.f32 %v262, 0.0
    %v271 = vmax.f32 %v267, 0.0
    %272 = vst [vmem:[#allocation8] sm:$0xff] %v270
    %273 = vst [vmem:[#allocation8 + $0x8] sm:$0xff] %v271
    // Predicated region
    $region34: #{tpu_custom_call.1} parent=1 // pred_check
      _
    $region35: #{tpu_custom_call.1} parent=1 // pred_check_branch
      %275 = sbr.rel (0) target = $region37
    $region36: #{tpu_custom_call.1} parent=1 // pred_region
      %s277 = ssub.s32 256, 256
      %278 = vsyncadd [#allocation4], %s277
      %s279 = sshll.u32 [#allocation8], 4
      %s280 = int_to_ptr.vmem [resolvable:$true] %s279
      %285 = dma.vmem_to_hbm [thread:$0]  %s280, 256, %s5, [#allocation4], 128, 128, 8
    $region37: #{tpu_custom_call.1} parent=1 // pred_fallthru
      _
    // Predicated region
    $region38: #{tpu_custom_call.1} parent=1 // pred_check
      _
    $region39: #{tpu_custom_call.1} parent=1 // pred_check_branch
      %287 = sbr.rel (0) target = $region41
    $region40: #{tpu_custom_call.1} parent=1 // pred_region
      %288 = dma.done [#allocation4], 256
    $region41: #{tpu_custom_call.1} parent=1 // pred_fallthru
      _
    %289 = vsyncpa [#allocation3], 1
    %290 = vsyncpa [#allocation6], 1
    %291 = vsyncpa [#allocation4], 1

</llo_original>
